<compile_context>
chip_gen: v5e
topology: v5e:2x2
jax: 0.10.0
libtpu: 0.0.40
codegen_flags: <defaults>
</compile_context>

<pallas_src>
import functools
from typing import List

import jax
import jax.numpy as jnp
from jax.experimental import pallas as pl
from jax.experimental.pallas import tpu as pltpu


def _round_up(n: int, m: int) -> int:
    return ((n + m - 1) // m) * m


# ---------------------------------------------------------------------------
# Fused Pallas kernel: whole MLP in one grid step, activation stays in vregs.
# ---------------------------------------------------------------------------
def _fused_mlp_kernel(*refs, num_layers: int, matmul_dtype):
    # refs = (x_ref, w_0, b_0, ..., w_{L-1}, b_{L-1}, o_ref)
    # x_ref: (tb, D0)   w_i: (D_i, D_{i+1})   b_i: (1, D_{i+1})   o_ref: (tb, DLp)
    x_ref = refs[0]
    o_ref = refs[-1]

    h = x_ref[...].astype(jnp.float32)
    for i in range(num_layers):                     # unrolled at trace time
        w = refs[1 + 2 * i][...]                    # already in matmul_dtype
        b = refs[2 + 2 * i][...].astype(jnp.float32)
        h = jnp.dot(h.astype(matmul_dtype), w,
                    preferred_element_type=jnp.float32) + b   # f32 epilogue
        if i < num_layers - 1:
            h = jnp.tanh(h)                          # EUP transcendental (f32)
    o_ref[...] = h.astype(o_ref.dtype)


# ---------------------------------------------------------------------------
# One-time parameter preparation (call OUTSIDE the per-step forward).
# ---------------------------------------------------------------------------
def prepare_params(params, matmul_dtype=jnp.float32):
    """params: list of (w, b), w shaped (in, out).  Returns (prepped, out_dim).

    - weights kept at native size, cast once to `matmul_dtype`
    - biases reshaped to (1, out), kept f32 (f32 epilogue everywhere)
    - ONLY the final layer's out dim is zero-padded to 128 lanes so the
      kernel's output store is lane-dense (unmasked vst).
    """
    num_layers = len(params)
    out_dim = params[-1][0].shape[1]
    out_dim_p = _round_up(out_dim, 128)

    prepped = []
    for i, (w, b) in enumerate(params):
        din, dout = w.shape
        if i == num_layers - 1 and dout != out_dim_p:
            w = jnp.zeros((din, out_dim_p), w.dtype).at[:, :dout].set(w)
            b = jnp.zeros((out_dim_p,), b.dtype).at[:dout].set(b)
        prepped.append((w.astype(matmul_dtype),
                        b.reshape(1, -1).astype(jnp.float32)))
    return prepped, out_dim


# ---------------------------------------------------------------------------
# Forward: one small pad of x + one pallas_call.
# ---------------------------------------------------------------------------
def mlp_forward(prepped, x, *, out_dim: int, batch_tile=None):
    """prepped: output of prepare_params; x: (B, input_dim) f32."""
    B, din = x.shape
    num_layers = len(prepped)
    dlast = prepped[-1][0].shape[1]          # padded to a multiple of 128
    matmul_dtype = prepped[0][0].dtype

    flat = []
    for (w, b) in prepped:
        flat.extend([w, b])

    kernel = functools.partial(_fused_mlp_kernel,
                               num_layers=num_layers,
                               matmul_dtype=matmul_dtype)

    use_grid = batch_tile is not None and _round_up(B, 8) > batch_tile
    if use_grid:
        assert batch_tile % 8 == 0, "batch_tile must be a multiple of 8"
        Bp = _round_up(B, batch_tile)
    else:
        Bp = _round_up(B, 8)

    if Bp != B:
        x = jnp.zeros((Bp, din), x.dtype).at[:B, :].set(x)

    if not use_grid:
        # Tiny batch: single VMEM block, no grid.
        vmem = pl.BlockSpec(memory_space=pltpu.MemorySpace.VMEM)
        out_padded = pl.pallas_call(
            kernel,
            out_shape=jax.ShapeDtypeStruct((Bp, dlast), x.dtype),
            in_specs=[vmem] * (1 + 2 * num_layers),
            out_specs=vmem,
        )(x, *flat)
    else:
        # Batch-tiled grid: shardable across v7x's two TensorCores,
        # pipelined activation DMA; weights use constant-index full blocks.
        tb = batch_tile
        in_specs = [pl.BlockSpec((tb, din), lambda i: (i, 0))]
        for (w, b) in prepped:
            in_specs.append(pl.BlockSpec(w.shape, lambda i: (0, 0)))
            in_specs.append(pl.BlockSpec(b.shape, lambda i: (0, 0)))
        out_padded = pl.pallas_call(
            kernel,
            out_shape=jax.ShapeDtypeStruct((Bp, dlast), x.dtype),
            grid=(Bp // tb,),
            in_specs=in_specs,
            out_specs=pl.BlockSpec((tb, dlast), lambda i: (i, 0)),
            compiler_params=pltpu.CompilerParams(
                dimension_semantics=("parallel",)),
        )(x, *flat)

    return out_padded[:B, :out_dim]


# ---------------------------------------------------------------------------
# MLPModel-equivalent parameter construction (mirrors the PyTorch __init__).
# ---------------------------------------------------------------------------
def init_mlp_params(key, input_dim: int, output_dim: int,
                    hidden_dim: List[int]):
    """Layers: Linear(input_dim, hidden_dim[0]);
               for dim in hidden_dim: Tanh, Linear(prev, dim);
               Tanh, Linear(prev, output_dim).
    (Intentionally duplicates a hidden_dim[0]->hidden_dim[0] layer, matching
     the reference PyTorch module.)  Weights stored as (in, out)."""
    dims = [(input_dim, hidden_dim[0])]
    prev = hidden_dim[0]
    for d in hidden_dim:
        dims.append((prev, d))
        prev = d
    dims.append((prev, output_dim))

    params = []
    for (din, dout) in dims:
        key, kw, kb = jax.random.split(key, 3)
        bound = 1.0 / jnp.sqrt(jnp.float32(din))  # PyTorch default init range
        w = jax.random.uniform(kw, (din, dout), jnp.float32, -bound, bound)
        b = jax.random.uniform(kb, (dout,), jnp.float32, -bound, bound)
        params.append((w, b))
    return params


def mlp_forward_ref(params, x):
    """Plain-JAX reference for correctness checking."""
    n = len(params)
    h = x
    for i, (w, b) in enumerate(params):
        h = h @ w + b
        if i < n - 1:
            h = jnp.tanh(h)
    return h


if __name__ == "__main__":
    input_dim, output_dim = 32, 8
    hidden_dim = [32, 16]
    batch = 4

    key = jax.random.PRNGKey(0)
    kp, kx = jax.random.split(key)
    params = init_mlp_params(kp, input_dim, output_dim, hidden_dim)
    x = jax.random.normal(kx, (batch, input_dim), dtype=jnp.float32)

    fwd = jax.jit(mlp_forward, static_argnames=("out_dim", "batch_tile"))

    # --- f32 path: exact parity with the PyTorch/f32 reference (tiny batch,
    #     gridless single-block form). -------------------------------------
    prepped_f32, out_dim = prepare_params(params, matmul_dtype=jnp.float32)
    out = jax.block_until_ready(fwd(prepped_f32, x, out_dim=out_dim))
    ref = mlp_forward_ref(params, x)
    assert out.shape == (batch, output_dim)
    assert jnp.allclose(out, ref, atol=1e-5, rtol=1e-5), "f32 mismatch vs ref"

    # --- bf16-matmul path + batch-tiled ("parallel") grid: larger batch,
    #     looser tolerance (bf16 MXU inputs, f32 accumulation/epilogue). ----
    batch2 = 64
    x2 = jax.random.normal(jax.random.PRNGKey(1), (batch2, input_dim),
                           dtype=jnp.float32)
    prepped_bf16, _ = prepare_params(params, matmul_dtype=jnp.bfloat16)
    out2 = jax.block_until_ready(
        fwd(prepped_bf16, x2, out_dim=out_dim, batch_tile=16))
    ref2 = mlp_forward_ref(params, x2)
    assert out2.shape == (batch2, output_dim)
    assert jnp.allclose(out2, ref2, atol=1e-1, rtol=1e-1), "bf16 mismatch vs ref"

    print("KERNEL_OK")
</pallas_src>

<mosaic_0001>
module attributes {stable_mosaic.version = 11 : i64} {
  func.func @_fused_mlp_kernel(%arg0: memref<8x32xf32, #tpu.memory_space<vmem>>, %arg1: memref<32x32xf32, #tpu.memory_space<vmem>>, %arg2: memref<1x32xf32, #tpu.memory_space<vmem>>, %arg3: memref<32x32xf32, #tpu.memory_space<vmem>>, %arg4: memref<1x32xf32, #tpu.memory_space<vmem>>, %arg5: memref<32x16xf32, #tpu.memory_space<vmem>>, %arg6: memref<1x16xf32, #tpu.memory_space<vmem>>, %arg7: memref<16x128xf32, #tpu.memory_space<vmem>>, %arg8: memref<1x128xf32, #tpu.memory_space<vmem>>, %arg9: memref<8x128xf32, #tpu.memory_space<vmem>>) attributes {dimension_semantics = [], scalar_prefetch = 0 : i64, scratch_operands = 0 : i64, tpu.core_type = #tpu.core_type<tc>} {
    %c0 = arith.constant 0 : index
    %c0_0 = arith.constant 0 : index
    %0 = vector.load %arg0[%c0, %c0_0] : memref<8x32xf32, #tpu.memory_space<vmem>>, vector<8x32xf32>
    %c0_1 = arith.constant 0 : index
    %c0_2 = arith.constant 0 : index
    %1 = vector.load %arg1[%c0_1, %c0_2] : memref<32x32xf32, #tpu.memory_space<vmem>>, vector<32x32xf32>
    %c0_3 = arith.constant 0 : index
    %c0_4 = arith.constant 0 : index
    %2 = vector.load %arg2[%c0_3, %c0_4] : memref<1x32xf32, #tpu.memory_space<vmem>>, vector<1x32xf32>
    %cst = arith.constant dense<0.000000e+00> : vector<8x32xf32>
    %3 = tpu.matmul %0, %1, %cst {dimension_numbers = #tpu.dot_dimension_numbers<[1], [0], [0], [1], [0, 0, 1, 1], [], []>} : vector<8x32xf32>, vector<32x32xf32>, vector<8x32xf32> -> vector<8x32xf32>
    %4 = vector.broadcast %2 : vector<1x32xf32> to vector<8x32xf32>
    %5 = arith.addf %3, %4 : vector<8x32xf32>
    %6 = math.tanh %5 : vector<8x32xf32>
    %c0_5 = arith.constant 0 : index
    %c0_6 = arith.constant 0 : index
    %7 = vector.load %arg3[%c0_5, %c0_6] : memref<32x32xf32, #tpu.memory_space<vmem>>, vector<32x32xf32>
    %c0_7 = arith.constant 0 : index
    %c0_8 = arith.constant 0 : index
    %8 = vector.load %arg4[%c0_7, %c0_8] : memref<1x32xf32, #tpu.memory_space<vmem>>, vector<1x32xf32>
    %cst_9 = arith.constant dense<0.000000e+00> : vector<8x32xf32>
    %9 = tpu.matmul %6, %7, %cst_9 {dimension_numbers = #tpu.dot_dimension_numbers<[1], [0], [0], [1], [0, 0, 1, 1], [], []>} : vector<8x32xf32>, vector<32x32xf32>, vector<8x32xf32> -> vector<8x32xf32>
    %10 = vector.broadcast %8 : vector<1x32xf32> to vector<8x32xf32>
    %11 = arith.addf %9, %10 : vector<8x32xf32>
    %12 = math.tanh %11 : vector<8x32xf32>
    %c0_10 = arith.constant 0 : index
    %c0_11 = arith.constant 0 : index
    %13 = vector.load %arg5[%c0_10, %c0_11] : memref<32x16xf32, #tpu.memory_space<vmem>>, vector<32x16xf32>
    %c0_12 = arith.constant 0 : index
    %c0_13 = arith.constant 0 : index
    %14 = vector.load %arg6[%c0_12, %c0_13] : memref<1x16xf32, #tpu.memory_space<vmem>>, vector<1x16xf32>
    %cst_14 = arith.constant dense<0.000000e+00> : vector<8x16xf32>
    %15 = tpu.matmul %12, %13, %cst_14 {dimension_numbers = #tpu.dot_dimension_numbers<[1], [0], [0], [1], [0, 0, 1, 1], [], []>} : vector<8x32xf32>, vector<32x16xf32>, vector<8x16xf32> -> vector<8x16xf32>
    %16 = vector.broadcast %14 : vector<1x16xf32> to vector<8x16xf32>
    %17 = arith.addf %15, %16 : vector<8x16xf32>
    %18 = math.tanh %17 : vector<8x16xf32>
    %c0_15 = arith.constant 0 : index
    %c0_16 = arith.constant 0 : index
    %19 = vector.load %arg7[%c0_15, %c0_16] : memref<16x128xf32, #tpu.memory_space<vmem>>, vector<16x128xf32>
    %c0_17 = arith.constant 0 : index
    %c0_18 = arith.constant 0 : index
    %20 = vector.load %arg8[%c0_17, %c0_18] : memref<1x128xf32, #tpu.memory_space<vmem>>, vector<1x128xf32>
    %cst_19 = arith.constant dense<0.000000e+00> : vector<8x128xf32>
    %21 = tpu.matmul %18, %19, %cst_19 {dimension_numbers = #tpu.dot_dimension_numbers<[1], [0], [0], [1], [0, 0, 1, 1], [], []>} : vector<8x16xf32>, vector<16x128xf32>, vector<8x128xf32> -> vector<8x128xf32>
    %22 = vector.broadcast %20 : vector<1x128xf32> to vector<8x128xf32>
    %23 = arith.addf %21, %22 : vector<8x128xf32>
    %c0_20 = arith.constant 0 : index
    %c0_21 = arith.constant 0 : index
    %24 = vector.load %arg9[%c0_20, %c0_21] : memref<8x128xf32, #tpu.memory_space<vmem>>, vector<8x128xf32>
    tpu.vector_store %arg9[%c0_20, %c0_21], %23 {strides = array<i32>} : memref<8x128xf32, #tpu.memory_space<vmem>>, vector<8x128xf32>,
    return
  }
}

</mosaic_0001>

<llo_original>
// kernel: mlp_forward.1
$region0: #{mlp_forward.1}
  #allocation0 [shape = 'u32[]', space=smem, size = 0x4, offset = 0x4, fixed_abs, tag = 'smem constant byte address 0x4 - core index']
  #allocation1 [shape = 'u32[72,128]{1,0:T(1,128)}', space=vmem, size = 0x9000, scoped, tag = 'internal scratch']
  %s0 = inlined_call_operand.vmem [shape: f32[8,32], index: 0, kind: input, shape index: {}]
  %s1 = inlined_call_operand.vmem [shape: f32[32,32], index: 1, kind: input, shape index: {}]
  %s2 = inlined_call_operand.hbm [shape: f32[1,32], index: 2, kind: input, shape index: {}]
  %s3 = inlined_call_operand.hbm [shape: f32[32,32], index: 3, kind: input, shape index: {}]
  %s4 = inlined_call_operand.hbm [shape: f32[1,32], index: 4, kind: input, shape index: {}]
  %s5 = inlined_call_operand.vmem [shape: f32[32,16], index: 5, kind: input, shape index: {}]
  %s6 = inlined_call_operand.hbm [shape: f32[1,16], index: 6, kind: input, shape index: {}]
  %s7 = inlined_call_operand.vmem [shape: f32[16,128], index: 7, kind: input, shape index: {}]
  %s8 = inlined_call_operand.hbm [shape: f32[1,128], index: 8, kind: input, shape index: {}]
  %s9 = inlined_call_operand.vmem [shape: f32[8,128], index: 9, kind: output, shape index: {}]
  %s10 = sld [smem:[#allocation0]]
  $region66: #{mlp_forward.1} parent=0
    _
  %s12 = ssub.s32 1, %s10
  %s13 = scalar_select 0, %s12, %s10
  $region1: #{mlp_forward.1} parent=0
    #allocation2 [shape = 'u8[512]{0}', space=vmem, size = 0x400, scoped, tag = 'input window, operand 2, single buffered']
    #allocation3 [shape = 's32[1]{0}', space=sflag, size = 0x4, scoped, tag = 'scoped memory for mlp_forward.1']
    #allocation4 [shape = 'u8[16384]{0}', space=vmem, size = 0x4000, scoped, tag = 'input window, operand 3, single buffered']
    #allocation5 [shape = 's32[1]{0}', space=sflag, size = 0x4, scoped, tag = 'scoped memory for mlp_forward.1']
    #allocation6 [shape = 'u8[512]{0}', space=vmem, size = 0x400, scoped, tag = 'input window, operand 4, single buffered']
    #allocation7 [shape = 'u8[512]{0}', space=vmem, size = 0x400, scoped, tag = 'input window, operand 6, single buffered']
    #allocation8 [shape = 's32[1]{0}', space=sflag, size = 0x4, scoped, tag = 'scoped memory for mlp_forward.1']
    #allocation9 [shape = 'u8[512]{0}', space=vmem, size = 0x400, scoped, tag = 'input window, operand 8, single buffered']
    %14 = vsyncpa [#allocation3], 0
    %15 = vsyncpa [#allocation5], 0
    %16 = vsyncpa [#allocation8], 0
    // Predicated region
    $region2: #{mlp_forward.1} parent=1 // pred_check
      _
    $region3: #{mlp_forward.1} parent=1 // pred_check_branch
      %18 = sbr.rel (0) target = $region5
    $region4: #{mlp_forward.1} parent=1 // pred_region
      _
    $region5: #{mlp_forward.1} parent=1 // pred_fallthru
      _
    // Predicated region
    $region6: #{mlp_forward.1} parent=1 // pred_check
      _
    $region7: #{mlp_forward.1} parent=1 // pred_check_branch
      %20 = sbr.rel (0) target = $region9
    $region8: #{mlp_forward.1} parent=1 // pred_region
      _
    $region9: #{mlp_forward.1} parent=1 // pred_fallthru
      _
    // Predicated region
    $region10: #{mlp_forward.1} parent=1 // pred_check
      _
    $region11: #{mlp_forward.1} parent=1 // pred_check_branch
      %22 = sbr.rel (0) target = $region13
    $region12: #{mlp_forward.1} parent=1 // pred_region
      %24 = vsyncadd [#allocation3], 0
      %s26 = sshll.u32 %s2, 4
      %s27 = int_to_ptr.hbm [resolvable:$true] %s26
      %s28 = sshll.u32 [#allocation2], 4
      %s29 = int_to_ptr.vmem [resolvable:$true] %s28
      %31 = dma.hbm_to_vmem [thread:$0]  %s27, 16, %s29, [#allocation3]
    $region13: #{mlp_forward.1} parent=1 // pred_fallthru
      _
    // Predicated region
    $region14: #{mlp_forward.1} parent=1 // pred_check
      _
    $region15: #{mlp_forward.1} parent=1 // pred_check_branch
      %33 = sbr.rel (0) target = $region17
    $region16: #{mlp_forward.1} parent=1 // pred_region
      %35 = vsyncadd [#allocation5], 0
      %s36 = sshll.u32 %s3, 4
      %s37 = int_to_ptr.hbm [resolvable:$true] %s36
      %s38 = sshll.u32 [#allocation4], 4
      %s39 = int_to_ptr.vmem [resolvable:$true] %s38
      %44 = dma.hbm_to_vmem [thread:$0]  %s37, 512, %s39, [#allocation5], 128, 128, 8
    $region17: #{mlp_forward.1} parent=1 // pred_fallthru
      _
    // Predicated region
    $region18: #{mlp_forward.1} parent=1 // pred_check
      _
    $region19: #{mlp_forward.1} parent=1 // pred_check_branch
      %46 = sbr.rel (0) target = $region21
    $region20: #{mlp_forward.1} parent=1 // pred_region
      %48 = vsyncadd [#allocation5], 0
      %s50 = sshll.u32 %s4, 4
      %s51 = int_to_ptr.hbm [resolvable:$true] %s50
      %s52 = sshll.u32 [#allocation6], 4
      %s53 = int_to_ptr.vmem [resolvable:$true] %s52
      %55 = dma.hbm_to_vmem [thread:$0]  %s51, 16, %s53, [#allocation5]
    $region21: #{mlp_forward.1} parent=1 // pred_fallthru
      _
    // Predicated region
    $region22: #{mlp_forward.1} parent=1 // pred_check
      _
    $region23: #{mlp_forward.1} parent=1 // pred_check_branch
      %57 = sbr.rel (0) target = $region25
    $region24: #{mlp_forward.1} parent=1 // pred_region
      _
    $region25: #{mlp_forward.1} parent=1 // pred_fallthru
      _
    // Predicated region
    $region26: #{mlp_forward.1} parent=1 // pred_check
      _
    $region27: #{mlp_forward.1} parent=1 // pred_check_branch
      %59 = sbr.rel (0) target = $region29
    $region28: #{mlp_forward.1} parent=1 // pred_region
      %61 = vsyncadd [#allocation8], 0
      %s63 = sshll.u32 %s6, 4
      %s64 = int_to_ptr.hbm [resolvable:$true] %s63
      %s65 = sshll.u32 [#allocation7], 4
      %s66 = int_to_ptr.vmem [resolvable:$true] %s65
      %68 = dma.hbm_to_vmem [thread:$0]  %s64, 16, %s66, [#allocation8]
    $region29: #{mlp_forward.1} parent=1 // pred_fallthru
      _
    // Predicated region
    $region30: #{mlp_forward.1} parent=1 // pred_check
      _
    $region31: #{mlp_forward.1} parent=1 // pred_check_branch
      %70 = sbr.rel (0) target = $region33
    $region32: #{mlp_forward.1} parent=1 // pred_region
      _
    $region33: #{mlp_forward.1} parent=1 // pred_fallthru
      _
    // Predicated region
    $region34: #{mlp_forward.1} parent=1 // pred_check
      _
    $region35: #{mlp_forward.1} parent=1 // pred_check_branch
      %72 = sbr.rel (0) target = $region37
    $region36: #{mlp_forward.1} parent=1 // pred_region
      %74 = vsyncadd [#allocation8], 0
      %s76 = sshll.u32 %s8, 4
      %s77 = int_to_ptr.hbm [resolvable:$true] %s76
      %s78 = sshll.u32 [#allocation9], 4
      %s79 = int_to_ptr.vmem [resolvable:$true] %s78
      %81 = dma.hbm_to_vmem [thread:$0]  %s77, 16, %s79, [#allocation8]
    $region37: #{mlp_forward.1} parent=1 // pred_fallthru
      _
    // Predicated region
    $region38: #{mlp_forward.1} parent=1 // pred_check
      _
    $region39: #{mlp_forward.1} parent=1 // pred_check_branch
      %83 = sbr.rel (0) target = $region41
    $region40: #{mlp_forward.1} parent=1 // pred_region
      %85 = dma.done [#allocation3], 16
    $region41: #{mlp_forward.1} parent=1 // pred_fallthru
      _
    // Predicated region
    $region42: #{mlp_forward.1} parent=1 // pred_check
      _
    $region43: #{mlp_forward.1} parent=1 // pred_check_branch
      %87 = sbr.rel (0) target = $region45
    $region44: #{mlp_forward.1} parent=1 // pred_region
      %89 = dma.done [#allocation5], 512
    $region45: #{mlp_forward.1} parent=1 // pred_fallthru
      _
    // Predicated region
    $region46: #{mlp_forward.1} parent=1 // pred_check
      _
    $region47: #{mlp_forward.1} parent=1 // pred_check_branch
      %91 = sbr.rel (0) target = $region49
    $region48: #{mlp_forward.1} parent=1 // pred_region
      %93 = dma.done [#allocation5], 16
    $region49: #{mlp_forward.1} parent=1 // pred_fallthru
      _
    // Predicated region
    $region50: #{mlp_forward.1} parent=1 // pred_check
      _
    $region51: #{mlp_forward.1} parent=1 // pred_check_branch
      %95 = sbr.rel (0) target = $region53
    $region52: #{mlp_forward.1} parent=1 // pred_region
      %97 = dma.done [#allocation8], 16
    $region53: #{mlp_forward.1} parent=1 // pred_fallthru
      _
    // Predicated region
    $region54: #{mlp_forward.1} parent=1 // pred_check
      _
    $region55: #{mlp_forward.1} parent=1 // pred_check_branch
      %99 = sbr.rel (0) target = $region57
    $region56: #{mlp_forward.1} parent=1 // pred_region
      %101 = dma.done [#allocation8], 16
    $region57: #{mlp_forward.1} parent=1 // pred_fallthru
      _
    %v102 = vld [vmem:[%s0] sm:$0xff]
    %v103 = vld [vmem:[%s1] sm:$0xff]
    %v104 = vld [vmem:[%s1 + $0x8] sm:$0xff]
    %v105 = vld [vmem:[%s1 + $0x10] sm:$0xff]
    %v106 = vld [vmem:[%s1 + $0x18] sm:$0xff]
    %v107 = vld [vmem:[#allocation2] sm:$0x1]
    %v109 = vperm.slane %v107, 0
    %vm111 = vcmask 261120
    %v113 = vsel %vm111, %v102, 0
    %115 = vmatpush.msra.mxu0 0.0
    %116 = vmatpush.msra.mxu0 0.0
    %117 = vmatpush.msra.mxu0 0.0
    %118 = vmatpush.msra.mxu0 0.0
    %119 = vmatpush.msra.mxu0 0.0
    %120 = vmatpush.msra.mxu0 0.0
    %121 = vmatpush.msra.mxu0 0.0
    %122 = vmatpush.msra.mxu0 0.0
    %123 = vmatpush.msra.mxu0 0.0
    %124 = vmatpush.msra.mxu0 0.0
    %125 = vmatpush.msra.mxu0 0.0
    %126 = vmatpush.msra.mxu0 0.0
    %127 = vmatpush.msra.mxu0 %v106
    %128 = vmatpush.msra.mxu0 %v105
    %129 = vmatpush.msra.mxu0 %v104
    %130 = vmatpush.msra.mxu0 %v103
    %131 = vmatmul.f32.gmra.mxu0 %v113
    %v132 = vpop.f32.mrf.mxu0
    %v133 = vadd.f32 %v109, %v132
    %134 = vdwg.mxu0
    %v135 = vtanh.pop %v133
    %v136 = vld [vmem:[#allocation4] sm:$0xff]
    %v137 = vld [vmem:[#allocation4 + $0x8] sm:$0xff]
    %v138 = vld [vmem:[#allocation4 + $0x10] sm:$0xff]
    %v139 = vld [vmem:[#allocation4 + $0x18] sm:$0xff]
    %v140 = vld [vmem:[#allocation6] sm:$0x1]
    %v142 = vperm.slane %v140, 0
    %v145 = vsel %vm111, %v135, 0
    %147 = vmatpush.msra.mxu0 0.0
    %148 = vmatpush.msra.mxu0 0.0
    %149 = vmatpush.msra.mxu0 0.0
    %150 = vmatpush.msra.mxu0 0.0
    %151 = vmatpush.msra.mxu0 0.0
    %152 = vmatpush.msra.mxu0 0.0
    %153 = vmatpush.msra.mxu0 0.0
    %154 = vmatpush.msra.mxu0 0.0
    %155 = vmatpush.msra.mxu0 0.0
    %156 = vmatpush.msra.mxu0 0.0
    %157 = vmatpush.msra.mxu0 0.0
    %158 = vmatpush.msra.mxu0 0.0
    %159 = vmatpush.msra.mxu0 %v139
    %160 = vmatpush.msra.mxu0 %v138
    %161 = vmatpush.msra.mxu0 %v137
    %162 = vmatpush.msra.mxu0 %v136
    %163 = vmatmul.f32.gmra.mxu0 %v145
    %v164 = vpop.f32.mrf.mxu0
    %v165 = vadd.f32 %v142, %v164
    %166 = vdwg.mxu0
    %v167 = vtanh.pop %v165
    %v168 = vld [vmem:[%s5] sm:$0xff]
    %v169 = vld [vmem:[%s5 + $0x8] sm:$0xff]
    %v170 = vld [vmem:[%s5 + $0x10] sm:$0xff]
    %v171 = vld [vmem:[%s5 + $0x18] sm:$0xff]
    %v172 = vld [vmem:[#allocation7] sm:$0x1]
    %v174 = vperm.slane %v172, 0
    %v177 = vsel %vm111, %v167, 0
    %179 = vmatpush.msra.mxu0 0.0
    %180 = vmatpush.msra.mxu0 0.0
    %181 = vmatpush.msra.mxu0 0.0
    %182 = vmatpush.msra.mxu0 0.0
    %183 = vmatpush.msra.mxu0 0.0
    %184 = vmatpush.msra.mxu0 0.0
    %185 = vmatpush.msra.mxu0 0.0
    %186 = vmatpush.msra.mxu0 0.0
    %187 = vmatpush.msra.mxu0 0.0
    %188 = vmatpush.msra.mxu0 0.0
    %189 = vmatpush.msra.mxu0 0.0
    %190 = vmatpush.msra.mxu0 0.0
    %191 = vmatpush.msra.mxu0 %v171
    %192 = vmatpush.msra.mxu0 %v170
    %193 = vmatpush.msra.mxu0 %v169
    %194 = vmatpush.msra.mxu0 %v168
    %195 = vmatmul.f32.gmra.mxu0 %v177
    %v196 = vpop.f32.mrf.mxu0
    %v197 = vadd.f32 %v174, %v196
    %198 = vdwg.mxu0
    %v199 = vtanh.pop %v197
    %v200 = vld [vmem:[%s7] sm:$0xff]
    %v201 = vld [vmem:[%s7 + $0x8] sm:$0xff]
    %v202 = vld [vmem:[#allocation9] sm:$0x1]
    %v204 = vperm.slane %v202, 0
    %vm206 = vcmask 130048
    %v208 = vsel %vm206, %v199, 0
    %210 = vmatpush.msra.mxu0 0.0
    %211 = vmatpush.msra.mxu0 0.0
    %212 = vmatpush.msra.mxu0 0.0
    %213 = vmatpush.msra.mxu0 0.0
    %214 = vmatpush.msra.mxu0 0.0
    %215 = vmatpush.msra.mxu0 0.0
    %216 = vmatpush.msra.mxu0 0.0
    %217 = vmatpush.msra.mxu0 0.0
    %218 = vmatpush.msra.mxu0 0.0
    %219 = vmatpush.msra.mxu0 0.0
    %220 = vmatpush.msra.mxu0 0.0
    %221 = vmatpush.msra.mxu0 0.0
    %222 = vmatpush.msra.mxu0 0.0
    %223 = vmatpush.msra.mxu0 0.0
    %224 = vmatpush.msra.mxu0 %v201
    %225 = vmatpush.msra.mxu0 %v200
    %226 = vmatmul.f32.gmra.mxu0 %v208
    %v227 = vpop.f32.mrf.mxu0
    %v228 = vadd.f32 %v204, %v227
    %229 = vdwg.mxu0
    %230 = vst [vmem:[%s9] sm:$0xff] %v228
    // Predicated region
    $region58: #{mlp_forward.1} parent=1 // pred_check
      _
    $region59: #{mlp_forward.1} parent=1 // pred_check_branch
      %232 = sbr.rel (0) target = $region61
    $region60: #{mlp_forward.1} parent=1 // pred_region
      _
    $region61: #{mlp_forward.1} parent=1 // pred_fallthru
      _
    // Predicated region
    $region62: #{mlp_forward.1} parent=1 // pred_check
      _
    $region63: #{mlp_forward.1} parent=1 // pred_check_branch
      %234 = sbr.rel (0) target = $region65
    $region64: #{mlp_forward.1} parent=1 // pred_region
      _
    $region65: #{mlp_forward.1} parent=1 // pred_fallthru
      _
    %235 = vsyncpa [#allocation3], 1
    %236 = vsyncpa [#allocation5], 1
    %237 = vsyncpa [#allocation8], 1

</llo_original>
